<compile_context>
chip_gen: v6e
topology: v6e:2x2x1
jax: 0.10.0
libtpu: 0.0.40
codegen_flags: <defaults>
</compile_context>

<pallas_src>
import jax
import jax.numpy as jnp
from jax import lax
from jax.experimental import pallas as pl
from jax.experimental.pallas import tpu as pltpu


# ---------------------------------------------------------------------------
# Kernel A (main path): weight resident in VMEM, single pass per row tile.
#   y = x @ w^T + b   (MXU, f32 accumulation)
#   out = y / ||y||_2 (rsqrt on EUP)
# ---------------------------------------------------------------------------
def _embed_kernel_resident(x_ref, wt_ref, b_ref, o_ref):
    # Native-dtype operands (bf16 stays bf16); f32 accumulation on the MXU.
    y = jnp.dot(x_ref[...], wt_ref[...], preferred_element_type=jnp.float32)
    y = y + b_ref[...].astype(jnp.float32)                       # (TM, N)
    # L2 normalize along the lane axis.  Original Normalize: x / sqrt(sum(x^2)),
    # no eps — kept bit-faithful to the PyTorch module.
    sumsq = jnp.sum(y * y, axis=-1, keepdims=True)                # (TM, 1)
    o_ref[...] = (y * lax.rsqrt(sumsq)).astype(o_ref.dtype)


# ---------------------------------------------------------------------------
# Kernel B (fallback for very large dim_in): K-tiled f32 accumulation.
# ---------------------------------------------------------------------------
def _embed_kernel_ktiled(x_ref, wt_ref, b_ref, o_ref, acc_ref):
    k = pl.program_id(1)
    partial = jnp.dot(x_ref[...], wt_ref[...], preferred_element_type=jnp.float32)

    @pl.when(k == 0)
    def _():
        acc_ref[...] = partial            # init with first product (no zero-fill)

    @pl.when(k > 0)
    def _():
        acc_ref[...] += partial

    @pl.when(k == pl.num_programs(1) - 1)
    def _():
        y = acc_ref[...] + b_ref[...].astype(jnp.float32)
        sumsq = jnp.sum(y * y, axis=-1, keepdims=True)
        o_ref[...] = (y * lax.rsqrt(sumsq)).astype(o_ref.dtype)


# ---------------------------------------------------------------------------
# Wrapper
# ---------------------------------------------------------------------------
def _pick_row_tile(m_pad, cap=512):
    """Largest multiple of 8 that divides m_pad, capped at `cap`."""
    t = min(cap, m_pad)
    t -= t % 8
    while t >= 8:
        if m_pad % t == 0:
            return t
        t -= 8
    return 8


def embed_forward(x, weight, bias):
    """Pallas equivalent of Embed.forward.

    x:      (B, 4*dim_in) or (B, 4, dim_in)  (f32 or bf16; fed to MXU as-is)
    weight: (dim_out, dim_in)                 (nn.Linear layout)
    bias:   (dim_out,)
    returns (B, 4, dim_out), L2-normalized along the last dim.
    """
    B = x.shape[0]
    dim_out, dim_in = weight.shape
    K, N = dim_in, dim_out

    xf = x.reshape(B * 4, K)                  # matches torch .view(B, 4, -1); free reshape
    M = xf.shape[0]

    # Pad rows only to the 8-row sublane granule (no pad to a full tile).
    M_pad = ((M + 7) // 8) * 8
    if M_pad != M:
        xf = jnp.pad(xf, ((0, M_pad - M), (0, 0)))

    TM = _pick_row_tile(M_pad, cap=512)

    wt = weight.T                             # (K, N); constant-folds under jit
    b2 = bias.reshape(1, N)
    out_dtype = x.dtype

    cost = pl.CostEstimate(
        flops=2 * M_pad * K * N,
        transcendentals=M_pad,
        bytes_accessed=(M_pad * K * xf.dtype.itemsize
                        + K * N * wt.dtype.itemsize
                        + M_pad * N * jnp.dtype(out_dtype).itemsize),
    )

    # Weight resident if it fits comfortably in scoped VMEM on all generations
    # (v5e 16 MiB default is the tightest).
    resident_ok = K * N * wt.dtype.itemsize <= (8 << 20)

    if resident_ok:
        out_flat = pl.pallas_call(
            _embed_kernel_resident,
            out_shape=jax.ShapeDtypeStruct((M_pad, N), out_dtype),
            grid_spec=pltpu.PrefetchScalarGridSpec(
                num_scalar_prefetch=0,
                grid=(M_pad // TM,),
                in_specs=[
                    pl.BlockSpec((TM, K), lambda i: (i, 0)),   # x rows, streamed
                    pl.BlockSpec((K, N), lambda i: (0, 0)),    # weight, resident
                    pl.BlockSpec((1, N), lambda i: (0, 0)),    # bias, resident
                ],
                out_specs=pl.BlockSpec((TM, N), lambda i: (i, 0)),
            ),
            compiler_params=pltpu.CompilerParams(
                dimension_semantics=("parallel",),
            ),
            cost_estimate=cost,
        )(xf, wt, b2)
    else:
        # Fallback: tile the contraction axis.  Pad K to a lane-aligned tile
        # (zero padding contributes nothing to the dot product).
        TK = 512
        K_pad = ((K + TK - 1) // TK) * TK
        if K_pad != K:
            xf = jnp.pad(xf, ((0, 0), (0, K_pad - K)))
            wt = jnp.pad(wt, ((0, K_pad - K), (0, 0)))
        out_flat = pl.pallas_call(
            _embed_kernel_ktiled,
            out_shape=jax.ShapeDtypeStruct((M_pad, N), out_dtype),
            grid_spec=pltpu.PrefetchScalarGridSpec(
                num_scalar_prefetch=0,
                grid=(M_pad // TM, K_pad // TK),
                in_specs=[
                    pl.BlockSpec((TM, TK), lambda i, k: (i, k)),
                    pl.BlockSpec((TK, N), lambda i, k: (k, 0)),
                    pl.BlockSpec((1, N), lambda i, k: (0, 0)),
                ],
                out_specs=pl.BlockSpec((TM, N), lambda i, k: (i, 0)),
                scratch_shapes=[pltpu.VMEM((TM, N), jnp.float32)],
            ),
            compiler_params=pltpu.CompilerParams(
                dimension_semantics=("parallel", "arbitrary"),
            ),
            cost_estimate=cost,
        )(xf, wt, b2)

    return out_flat[:M].reshape(B, 4, N)


# ---------------------------------------------------------------------------
# Deterministic nn.Linear-style parameter init
# ---------------------------------------------------------------------------
def init_embed_params(key, dim_in=1024, dim_out=128):
    k_w, k_b = jax.random.split(key)
    bound = 1.0 / (dim_in ** 0.5)
    w = jax.random.uniform(k_w, (dim_out, dim_in), minval=-bound, maxval=bound,
                           dtype=jnp.float32)
    b = jax.random.uniform(k_b, (dim_out,), minval=-bound, maxval=bound,
                           dtype=jnp.float32)
    return {"weight": w, "bias": b}


# ---------------------------------------------------------------------------
# Pure-JAX reference (for sanity check)
# ---------------------------------------------------------------------------
def _reference(x, weight, bias):
    B = x.shape[0]
    dim_out, dim_in = weight.shape
    h = x.reshape(B, 4, dim_in) @ weight.T + bias                 # (B, 4, dim_out)
    norm = jnp.sqrt(jnp.sum(h * h, axis=-1, keepdims=True))
    return h / norm


if __name__ == "__main__":
    key = jax.random.PRNGKey(0)
    k_x, k_p = jax.random.split(key)

    # Small shapes consistent with module defaults: dim_in=1024, dim_out=128.
    B, dim_in, dim_out = 4, 1024, 128
    params = init_embed_params(k_p, dim_in=dim_in, dim_out=dim_out)

    # Input as it arrives in the module: (B, 4*dim_in); .view(B, 4, -1) inside forward.
    x = jax.random.normal(k_x, (B, 4 * dim_in), dtype=jnp.float32)

    fwd = jax.jit(embed_forward)

    # f32 path
    out = fwd(x, params["weight"], params["bias"])
    jax.block_until_ready(out)
    ref = _reference(x, params["weight"], params["bias"])
    assert out.shape == (B, 4, dim_out), out.shape
    assert jnp.allclose(out, ref, rtol=1e-5, atol=1e-5), float(jnp.max(jnp.abs(out - ref)))
    assert jnp.allclose(jnp.linalg.norm(out, axis=-1), 1.0, rtol=1e-4, atol=1e-4)

    # bf16 path (native-dtype MXU feed), looser tolerance.
    xb = x.astype(jnp.bfloat16)
    outb = fwd(xb, params["weight"], params["bias"])
    jax.block_until_ready(outb)
    refb = _reference(xb.astype(jnp.float32), params["weight"], params["bias"])
    assert outb.shape == (B, 4, dim_out)
    assert jnp.allclose(outb.astype(jnp.float32), refb, rtol=2e-2, atol=2e-2)

    print("KERNEL_OK")
</pallas_src>

<mosaic_0001>
module attributes {stable_mosaic.version = 11 : i64} {
  func.func @_embed_kernel_resident(%arg0: i32, %arg1: memref<16x1024xf32, #tpu.memory_space<vmem>>, %arg2: memref<1024x128xf32, #tpu.memory_space<vmem>>, %arg3: memref<1x128xf32, #tpu.memory_space<vmem>>, %arg4: memref<16x128xf32, #tpu.memory_space<vmem>>) attributes {dimension_semantics = [#tpu.dimension_semantics<parallel>], iteration_bounds = array<i64: 1>, scalar_prefetch = 0 : i64, scratch_operands = 0 : i64, tpu.core_type = #tpu.core_type<tc>, window_params = [{transform_indices = @transform_0, window_bounds = array<i64: 16, 1024>}, {pipeline_mode = #tpu.pipeline_mode<synchronous>, transform_indices = @transform_1, window_bounds = array<i64: 1024, 128>}, {pipeline_mode = #tpu.pipeline_mode<synchronous>, transform_indices = @transform_2, window_bounds = array<i64: 1, 128>}, {transform_indices = @transform_3, window_bounds = array<i64: 16, 128>}]} {
    %c0 = arith.constant 0 : index
    %c0_0 = arith.constant 0 : index
    %0 = vector.load %arg1[%c0, %c0_0] : memref<16x1024xf32, #tpu.memory_space<vmem>>, vector<16x1024xf32>
    %c0_1 = arith.constant 0 : index
    %c0_2 = arith.constant 0 : index
    %1 = vector.load %arg2[%c0_1, %c0_2] : memref<1024x128xf32, #tpu.memory_space<vmem>>, vector<1024x128xf32>
    %cst = arith.constant dense<0.000000e+00> : vector<16x128xf32>
    %2 = tpu.matmul %0, %1, %cst {dimension_numbers = #tpu.dot_dimension_numbers<[1], [0], [0], [1], [0, 0, 1, 1], [], []>} : vector<16x1024xf32>, vector<1024x128xf32>, vector<16x128xf32> -> vector<16x128xf32>
    %c0_3 = arith.constant 0 : index
    %c0_4 = arith.constant 0 : index
    %3 = vector.load %arg3[%c0_3, %c0_4] : memref<1x128xf32, #tpu.memory_space<vmem>>, vector<1x128xf32>
    %4 = vector.broadcast %3 : vector<1x128xf32> to vector<16x128xf32>
    %5 = arith.addf %2, %4 : vector<16x128xf32>
    %6 = arith.mulf %5, %5 : vector<16x128xf32>
    %cst_5 = arith.constant dense<0.000000e+00> : vector<16xf32>
    %7 = vector.multi_reduction <add>, %6, %cst_5 [1] : vector<16x128xf32> to vector<16xf32>
    %8 = vector.shape_cast %7 : vector<16xf32> to vector<16x1xf32>
    %9 = math.rsqrt %8 : vector<16x1xf32>
    %10 = vector.broadcast %9 : vector<16x1xf32> to vector<16x128xf32>
    %11 = arith.mulf %5, %10 : vector<16x128xf32>
    %c0_6 = arith.constant 0 : index
    %c0_7 = arith.constant 0 : index
    %12 = vector.load %arg4[%c0_6, %c0_7] : memref<16x128xf32, #tpu.memory_space<vmem>>, vector<16x128xf32>
    tpu.vector_store %arg4[%c0_6, %c0_7], %11 {strides = array<i32>} : memref<16x128xf32, #tpu.memory_space<vmem>>, vector<16x128xf32>,
    return
  }
  func.func @transform_0(%arg0: i32) -> (i32, i32) {
    %c0_i32 = arith.constant 0 : i32
    %c0_i32_0 = arith.constant 0 : i32
    return %arg0, %c0_i32 : i32, i32
  }
  func.func @transform_1(%arg0: i32) -> (i32, i32) {
    %c0_i32 = arith.constant 0 : i32
    %c0_i32_0 = arith.constant 0 : i32
    %c0_i32_1 = arith.constant 0 : i32
    return %c0_i32, %c0_i32_0 : i32, i32
  }
  func.func @transform_2(%arg0: i32) -> (i32, i32) {
    %c0_i32 = arith.constant 0 : i32
    %c0_i32_0 = arith.constant 0 : i32
    %c0_i32_1 = arith.constant 0 : i32
    return %c0_i32, %c0_i32_0 : i32, i32
  }
  func.func @transform_3(%arg0: i32) -> (i32, i32) {
    %c0_i32 = arith.constant 0 : i32
    %c0_i32_0 = arith.constant 0 : i32
    return %arg0, %c0_i32 : i32, i32
  }
}

</mosaic_0001>

<llo_original>
// kernel: embed_forward.1
$region0: #{embed_forward.1}
  #allocation0 [shape = 'u32[]', space=smem, size = 0x4, offset = 0x4, fixed_abs, tag = 'smem constant byte address 0x4 - core index']
  #allocation1 [shape = 'u32[144,128]{1,0:T(1,128)}', space=vmem, size = 0x12000, scoped, tag = 'internal scratch']
  %s0 = inlined_call_operand.vmem [shape: f32[16,1024], index: 0, kind: input, shape index: {}]
  %s1 = inlined_call_operand.vmem [shape: f32[1024,128], index: 1, kind: input, shape index: {}]
  %s2 = inlined_call_operand.vmem [shape: f32[1,128], index: 2, kind: input, shape index: {}]
  %s3 = inlined_call_operand.hbm [shape: f32[16,128], index: 3, kind: output, shape index: {}]
  %s4 = sld [smem:[#allocation0]]
  $region22: #{embed_forward.1} parent=0
    _
  %s6 = ssub.s32 1, %s4
  %s7 = scalar_select 0, %s6, %s4
  $region1: #{embed_forward.1} parent=0
    #allocation2 [shape = 'u8[8192]{0}', space=vmem, size = 0x2000, scoped, tag = 'output window, operand 0, single buffered']
    #allocation3 [shape = 's32[1]{0}', space=sflag, size = 0x4, scoped, tag = 'scoped memory for embed_forward.1']
    %8 = vsyncpa [#allocation3], 0
    // Predicated region
    $region2: #{embed_forward.1} parent=1 // pred_check
      _
    $region3: #{embed_forward.1} parent=1 // pred_check_branch
      %10 = sbr.rel (0) target = $region5
    $region4: #{embed_forward.1} parent=1 // pred_region
      _
    $region5: #{embed_forward.1} parent=1 // pred_fallthru
      _
    // Predicated region
    $region6: #{embed_forward.1} parent=1 // pred_check
      _
    $region7: #{embed_forward.1} parent=1 // pred_check_branch
      %12 = sbr.rel (0) target = $region9
    $region8: #{embed_forward.1} parent=1 // pred_region
      _
    $region9: #{embed_forward.1} parent=1 // pred_fallthru
      _
    // Predicated region
    $region10: #{embed_forward.1} parent=1 // pred_check
      _
    $region11: #{embed_forward.1} parent=1 // pred_check_branch
      %14 = sbr.rel (0) target = $region13
    $region12: #{embed_forward.1} parent=1 // pred_region
      _
    $region13: #{embed_forward.1} parent=1 // pred_fallthru
      _
    %v15 = vld [vmem:[%s0] sm:$0xff]
    %v16 = vld [vmem:[%s0 + $0x8] sm:$0xff]
    %v17 = vld [vmem:[%s0 + $0x10] sm:$0xff]
    %v18 = vld [vmem:[%s0 + $0x18] sm:$0xff]
    %v19 = vld [vmem:[%s0 + $0x20] sm:$0xff]
    %v20 = vld [vmem:[%s0 + $0x28] sm:$0xff]
    %v21 = vld [vmem:[%s0 + $0x30] sm:$0xff]
    %v22 = vld [vmem:[%s0 + $0x38] sm:$0xff]
    %v23 = vld [vmem:[%s0 + $0x40] sm:$0xff]
    %v24 = vld [vmem:[%s0 + $0x48] sm:$0xff]
    %v25 = vld [vmem:[%s0 + $0x50] sm:$0xff]
    %v26 = vld [vmem:[%s0 + $0x58] sm:$0xff]
    %v27 = vld [vmem:[%s0 + $0x60] sm:$0xff]
    %v28 = vld [vmem:[%s0 + $0x68] sm:$0xff]
    %v29 = vld [vmem:[%s0 + $0x70] sm:$0xff]
    %v30 = vld [vmem:[%s0 + $0x78] sm:$0xff]
    %v31 = vld [vmem:[%s1] sm:$0xff]
    %v32 = vld [vmem:[%s1 + $0x8] sm:$0xff]
    %v33 = vld [vmem:[%s1 + $0x10] sm:$0xff]
    %v34 = vld [vmem:[%s1 + $0x18] sm:$0xff]
    %v35 = vld [vmem:[%s1 + $0x20] sm:$0xff]
    %v36 = vld [vmem:[%s1 + $0x28] sm:$0xff]
    %v37 = vld [vmem:[%s1 + $0x30] sm:$0xff]
    %v38 = vld [vmem:[%s1 + $0x38] sm:$0xff]
    %v39 = vld [vmem:[%s1 + $0x40] sm:$0xff]
    %v40 = vld [vmem:[%s1 + $0x48] sm:$0xff]
    %v41 = vld [vmem:[%s1 + $0x50] sm:$0xff]
    %v42 = vld [vmem:[%s1 + $0x58] sm:$0xff]
    %v43 = vld [vmem:[%s1 + $0x60] sm:$0xff]
    %v44 = vld [vmem:[%s1 + $0x68] sm:$0xff]
    %v45 = vld [vmem:[%s1 + $0x70] sm:$0xff]
    %v46 = vld [vmem:[%s1 + $0x78] sm:$0xff]
    %v47 = vld [vmem:[%s1 + $0x80] sm:$0xff]
    %v48 = vld [vmem:[%s1 + $0x88] sm:$0xff]
    %v49 = vld [vmem:[%s1 + $0x90] sm:$0xff]
    %v50 = vld [vmem:[%s1 + $0x98] sm:$0xff]
    %v51 = vld [vmem:[%s1 + $0xa0] sm:$0xff]
    %v52 = vld [vmem:[%s1 + $0xa8] sm:$0xff]
    %v53 = vld [vmem:[%s1 + $0xb0] sm:$0xff]
    %v54 = vld [vmem:[%s1 + $0xb8] sm:$0xff]
    %v55 = vld [vmem:[%s1 + $0xc0] sm:$0xff]
    %v56 = vld [vmem:[%s1 + $0xc8] sm:$0xff]
    %v57 = vld [vmem:[%s1 + $0xd0] sm:$0xff]
    %v58 = vld [vmem:[%s1 + $0xd8] sm:$0xff]
    %v59 = vld [vmem:[%s1 + $0xe0] sm:$0xff]
    %v60 = vld [vmem:[%s1 + $0xe8] sm:$0xff]
    %v61 = vld [vmem:[%s1 + $0xf0] sm:$0xff]
    %v62 = vld [vmem:[%s1 + $0xf8] sm:$0xff]
    %v63 = vld [vmem:[%s1 + $0x100] sm:$0xff]
    %v64 = vld [vmem:[%s1 + $0x108] sm:$0xff]
    %v65 = vld [vmem:[%s1 + $0x110] sm:$0xff]
    %v66 = vld [vmem:[%s1 + $0x118] sm:$0xff]
    %v67 = vld [vmem:[%s1 + $0x120] sm:$0xff]
    %v68 = vld [vmem:[%s1 + $0x128] sm:$0xff]
    %v69 = vld [vmem:[%s1 + $0x130] sm:$0xff]
    %v70 = vld [vmem:[%s1 + $0x138] sm:$0xff]
    %v71 = vld [vmem:[%s1 + $0x140] sm:$0xff]
    %v72 = vld [vmem:[%s1 + $0x148] sm:$0xff]
    %v73 = vld [vmem:[%s1 + $0x150] sm:$0xff]
    %v74 = vld [vmem:[%s1 + $0x158] sm:$0xff]
    %v75 = vld [vmem:[%s1 + $0x160] sm:$0xff]
    %v76 = vld [vmem:[%s1 + $0x168] sm:$0xff]
    %v77 = vld [vmem:[%s1 + $0x170] sm:$0xff]
    %v78 = vld [vmem:[%s1 + $0x178] sm:$0xff]
    %v79 = vld [vmem:[%s1 + $0x180] sm:$0xff]
    %v80 = vld [vmem:[%s1 + $0x188] sm:$0xff]
    %v81 = vld [vmem:[%s1 + $0x190] sm:$0xff]
    %v82 = vld [vmem:[%s1 + $0x198] sm:$0xff]
    %v83 = vld [vmem:[%s1 + $0x1a0] sm:$0xff]
    %v84 = vld [vmem:[%s1 + $0x1a8] sm:$0xff]
    %v85 = vld [vmem:[%s1 + $0x1b0] sm:$0xff]
    %v86 = vld [vmem:[%s1 + $0x1b8] sm:$0xff]
    %v87 = vld [vmem:[%s1 + $0x1c0] sm:$0xff]
    %v88 = vld [vmem:[%s1 + $0x1c8] sm:$0xff]
    %v89 = vld [vmem:[%s1 + $0x1d0] sm:$0xff]
    %v90 = vld [vmem:[%s1 + $0x1d8] sm:$0xff]
    %v91 = vld [vmem:[%s1 + $0x1e0] sm:$0xff]
    %v92 = vld [vmem:[%s1 + $0x1e8] sm:$0xff]
    %v93 = vld [vmem:[%s1 + $0x1f0] sm:$0xff]
    %v94 = vld [vmem:[%s1 + $0x1f8] sm:$0xff]
    %v95 = vld [vmem:[%s1 + $0x200] sm:$0xff]
    %v96 = vld [vmem:[%s1 + $0x208] sm:$0xff]
    %v97 = vld [vmem:[%s1 + $0x210] sm:$0xff]
    %v98 = vld [vmem:[%s1 + $0x218] sm:$0xff]
    %v99 = vld [vmem:[%s1 + $0x220] sm:$0xff]
    %v100 = vld [vmem:[%s1 + $0x228] sm:$0xff]
    %v101 = vld [vmem:[%s1 + $0x230] sm:$0xff]
    %v102 = vld [vmem:[%s1 + $0x238] sm:$0xff]
    %v103 = vld [vmem:[%s1 + $0x240] sm:$0xff]
    %v104 = vld [vmem:[%s1 + $0x248] sm:$0xff]
    %v105 = vld [vmem:[%s1 + $0x250] sm:$0xff]
    %v106 = vld [vmem:[%s1 + $0x258] sm:$0xff]
    %v107 = vld [vmem:[%s1 + $0x260] sm:$0xff]
    %v108 = vld [vmem:[%s1 + $0x268] sm:$0xff]
    %v109 = vld [vmem:[%s1 + $0x270] sm:$0xff]
    %v110 = vld [vmem:[%s1 + $0x278] sm:$0xff]
    %v111 = vld [vmem:[%s1 + $0x280] sm:$0xff]
    %v112 = vld [vmem:[%s1 + $0x288] sm:$0xff]
    %v113 = vld [vmem:[%s1 + $0x290] sm:$0xff]
    %v114 = vld [vmem:[%s1 + $0x298] sm:$0xff]
    %v115 = vld [vmem:[%s1 + $0x2a0] sm:$0xff]
    %v116 = vld [vmem:[%s1 + $0x2a8] sm:$0xff]
    %v117 = vld [vmem:[%s1 + $0x2b0] sm:$0xff]
    %v118 = vld [vmem:[%s1 + $0x2b8] sm:$0xff]
    %v119 = vld [vmem:[%s1 + $0x2c0] sm:$0xff]
    %v120 = vld [vmem:[%s1 + $0x2c8] sm:$0xff]
    %v121 = vld [vmem:[%s1 + $0x2d0] sm:$0xff]
    %v122 = vld [vmem:[%s1 + $0x2d8] sm:$0xff]
    %v123 = vld [vmem:[%s1 + $0x2e0] sm:$0xff]
    %v124 = vld [vmem:[%s1 + $0x2e8] sm:$0xff]
    %v125 = vld [vmem:[%s1 + $0x2f0] sm:$0xff]
    %v126 = vld [vmem:[%s1 + $0x2f8] sm:$0xff]
    %v127 = vld [vmem:[%s1 + $0x300] sm:$0xff]
    %v128 = vld [vmem:[%s1 + $0x308] sm:$0xff]
    %v129 = vld [vmem:[%s1 + $0x310] sm:$0xff]
    %v130 = vld [vmem:[%s1 + $0x318] sm:$0xff]
    %v131 = vld [vmem:[%s1 + $0x320] sm:$0xff]
    %v132 = vld [vmem:[%s1 + $0x328] sm:$0xff]
    %v133 = vld [vmem:[%s1 + $0x330] sm:$0xff]
    %v134 = vld [vmem:[%s1 + $0x338] sm:$0xff]
    %v135 = vld [vmem:[%s1 + $0x340] sm:$0xff]
    %v136 = vld [vmem:[%s1 + $0x348] sm:$0xff]
    %v137 = vld [vmem:[%s1 + $0x350] sm:$0xff]
    %v138 = vld [vmem:[%s1 + $0x358] sm:$0xff]
    %v139 = vld [vmem:[%s1 + $0x360] sm:$0xff]
    %v140 = vld [vmem:[%s1 + $0x368] sm:$0xff]
    %v141 = vld [vmem:[%s1 + $0x370] sm:$0xff]
    %v142 = vld [vmem:[%s1 + $0x378] sm:$0xff]
    %v143 = vld [vmem:[%s1 + $0x380] sm:$0xff]
    %v144 = vld [vmem:[%s1 + $0x388] sm:$0xff]
    %v145 = vld [vmem:[%s1 + $0x390] sm:$0xff]
    %v146 = vld [vmem:[%s1 + $0x398] sm:$0xff]
    %v147 = vld [vmem:[%s1 + $0x3a0] sm:$0xff]
    %v148 = vld [vmem:[%s1 + $0x3a8] sm:$0xff]
    %v149 = vld [vmem:[%s1 + $0x3b0] sm:$0xff]
    %v150 = vld [vmem:[%s1 + $0x3b8] sm:$0xff]
    %v151 = vld [vmem:[%s1 + $0x3c0] sm:$0xff]
    %v152 = vld [vmem:[%s1 + $0x3c8] sm:$0xff]
    %v153 = vld [vmem:[%s1 + $0x3d0] sm:$0xff]
    %v154 = vld [vmem:[%s1 + $0x3d8] sm:$0xff]
    %v155 = vld [vmem:[%s1 + $0x3e0] sm:$0xff]
    %v156 = vld [vmem:[%s1 + $0x3e8] sm:$0xff]
    %v157 = vld [vmem:[%s1 + $0x3f0] sm:$0xff]
    %v158 = vld [vmem:[%s1 + $0x3f8] sm:$0xff]
    %v159 = vld [vmem:[%s2] sm:$0x1]
    %v161 = vlaneseq
    %v162 = vshrl.u32 %v161, 7
    %v163 = vsub.s32 0, %v162
    %v164 = vrot.slane %v159, %v163
    %166 = vmatprep.subr.mxu0 0.0
    %167 = vmatpush1.msra.mxu0 %v46
    %168 = vmatprep.subr.mxu0 0.0
    %169 = vmatpush1.msra.mxu0 %v45
    %170 = vmatprep.subr.mxu0 0.0
    %171 = vmatpush1.msra.mxu0 %v44
    %172 = vmatprep.subr.mxu0 0.0
    %173 = vmatpush1.msra.mxu0 %v43
    %174 = vmatprep.subr.mxu0 0.0
    %175 = vmatpush1.msra.mxu0 %v42
    %176 = vmatprep.subr.mxu0 0.0
    %177 = vmatpush1.msra.mxu0 %v41
    %178 = vmatprep.subr.mxu0 0.0
    %179 = vmatpush1.msra.mxu0 %v40
    %180 = vmatprep.subr.mxu0 0.0
    %181 = vmatpush1.msra.mxu0 %v39
    %182 = vmatprep.subr.mxu0 0.0
    %183 = vmatpush1.msra.mxu0 %v38
    %184 = vmatprep.subr.mxu0 0.0
    %185 = vmatpush1.msra.mxu0 %v37
    %186 = vmatprep.subr.mxu0 0.0
    %187 = vmatpush1.msra.mxu0 %v36
    %188 = vmatprep.subr.mxu0 0.0
    %189 = vmatpush1.msra.mxu0 %v35
    %190 = vmatprep.subr.mxu0 0.0
    %191 = vmatpush1.msra.mxu0 %v34
    %192 = vmatprep.subr.mxu0 0.0
    %193 = vmatpush1.msra.mxu0 %v33
    %194 = vmatprep.subr.mxu0 0.0
    %195 = vmatpush1.msra.mxu0 %v32
    %196 = vmatprep.subr.mxu0 0.0
    %197 = vmatpush1.msra.mxu0 %v31
    %198 = vmatprep.subr.mxu0 0.0
    %199 = vmatpush2.msra.mxu0 %v62
    %200 = vmatprep.subr.mxu0 0.0
    %201 = vmatpush2.msra.mxu0 %v61
    %202 = vmatprep.subr.mxu0 0.0
    %203 = vmatpush2.msra.mxu0 %v60
    %204 = vmatprep.subr.mxu0 0.0
    %205 = vmatpush2.msra.mxu0 %v59
    %206 = vmatprep.subr.mxu0 0.0
    %207 = vmatpush2.msra.mxu0 %v58
    %208 = vmatprep.subr.mxu0 0.0
    %209 = vmatpush2.msra.mxu0 %v57
    %210 = vmatprep.subr.mxu0 0.0
    %211 = vmatpush2.msra.mxu0 %v56
    %212 = vmatprep.subr.mxu0 0.0
    %213 = vmatpush2.msra.mxu0 %v55
    %214 = vmatprep.subr.mxu0 0.0
    %215 = vmatpush2.msra.mxu0 %v54
    %216 = vmatprep.subr.mxu0 0.0
    %217 = vmatpush2.msra.mxu0 %v53
    %218 = vmatprep.subr.mxu0 0.0
    %219 = vmatpush2.msra.mxu0 %v52
    %220 = vmatprep.subr.mxu0 0.0
    %221 = vmatpush2.msra.mxu0 %v51
    %222 = vmatprep.subr.mxu0 0.0
    %223 = vmatpush2.msra.mxu0 %v50
    %224 = vmatprep.subr.mxu0 0.0
    %225 = vmatpush2.msra.mxu0 %v49
    %226 = vmatprep.subr.mxu0 0.0
    %227 = vmatpush2.msra.mxu0 %v48
    %228 = vmatprep.subr.mxu0 0.0
    %229 = vmatpush2.msra.mxu0 %v47
    %230 = vmatprep.mubr.f32.mxu0 %v16
    %231 = vmatmul.mubr.f32.gmra.mxu0 %v15
    %v232 = vpop.f32.mrf.mxu0
    %v233 = vadd.f32 %v164, %v232
    %v234 = vpop.f32.mrf.mxu0
    %235 = vmatprep.mubr.f32.mxu0 %v24
    %236 = vmatmul.mubr.f32.gmra.mxu0 %v23
    %v237 = vpop.f32.mrf.mxu0
    %v238 = vadd.f32 %v164, %v237
    %v239 = vpop.f32.mrf.mxu0
    %240 = vdwg.mxu0
    %241 = vmatprep.subr.mxu0 0.0
    %242 = vmatpush1.msra.mxu0 %v78
    %243 = vmatprep.subr.mxu0 0.0
    %244 = vmatpush1.msra.mxu0 %v77
    %245 = vmatprep.subr.mxu0 0.0
    %246 = vmatpush1.msra.mxu0 %v76
    %247 = vmatprep.subr.mxu0 0.0
    %248 = vmatpush1.msra.mxu0 %v75
    %249 = vmatprep.subr.mxu0 0.0
    %250 = vmatpush1.msra.mxu0 %v74
    %251 = vmatprep.subr.mxu0 0.0
    %252 = vmatpush1.msra.mxu0 %v73
    %253 = vmatprep.subr.mxu0 0.0
    %254 = vmatpush1.msra.mxu0 %v72
    %255 = vmatprep.subr.mxu0 0.0
    %256 = vmatpush1.msra.mxu0 %v71
    %257 = vmatprep.subr.mxu0 0.0
    %258 = vmatpush1.msra.mxu0 %v70
    %259 = vmatprep.subr.mxu0 0.0
    %260 = vmatpush1.msra.mxu0 %v69
    %261 = vmatprep.subr.mxu0 0.0
    %262 = vmatpush1.msra.mxu0 %v68
    %263 = vmatprep.subr.mxu0 0.0
    %264 = vmatpush1.msra.mxu0 %v67
    %265 = vmatprep.subr.mxu0 0.0
    %266 = vmatpush1.msra.mxu0 %v66
    %267 = vmatprep.subr.mxu0 0.0
    %268 = vmatpush1.msra.mxu0 %v65
    %269 = vmatprep.subr.mxu0 0.0
    %270 = vmatpush1.msra.mxu0 %v64
    %271 = vmatprep.subr.mxu0 0.0
    %272 = vmatpush1.msra.mxu0 %v63
    %273 = vmatprep.subr.mxu0 0.0
    %274 = vmatpush2.msra.mxu0 %v94
    %275 = vmatprep.subr.mxu0 0.0
    %276 = vmatpush2.msra.mxu0 %v93
    %277 = vmatprep.subr.mxu0 0.0
    %278 = vmatpush2.msra.mxu0 %v92
    %279 = vmatprep.subr.mxu0 0.0
    %280 = vmatpush2.msra.mxu0 %v91
    %281 = vmatprep.subr.mxu0 0.0
    %282 = vmatpush2.msra.mxu0 %v90
    %283 = vmatprep.subr.mxu0 0.0
    %284 = vmatpush2.msra.mxu0 %v89
    %285 = vmatprep.subr.mxu0 0.0
    %286 = vmatpush2.msra.mxu0 %v88
    %287 = vmatprep.subr.mxu0 0.0
    %288 = vmatpush2.msra.mxu0 %v87
    %289 = vmatprep.subr.mxu0 0.0
    %290 = vmatpush2.msra.mxu0 %v86
    %291 = vmatprep.subr.mxu0 0.0
    %292 = vmatpush2.msra.mxu0 %v85
    %293 = vmatprep.subr.mxu0 0.0
    %294 = vmatpush2.msra.mxu0 %v84
    %295 = vmatprep.subr.mxu0 0.0
    %296 = vmatpush2.msra.mxu0 %v83
    %297 = vmatprep.subr.mxu0 0.0
    %298 = vmatpush2.msra.mxu0 %v82
    %299 = vmatprep.subr.mxu0 0.0
    %300 = vmatpush2.msra.mxu0 %v81
    %301 = vmatprep.subr.mxu0 0.0
    %302 = vmatpush2.msra.mxu0 %v80
    %303 = vmatprep.subr.mxu0 0.0
    %304 = vmatpush2.msra.mxu0 %v79
    %305 = vmatprep.mubr.f32.mxu0 %v18
    %306 = vmatmul.mubr.f32.gmra.mxu0 %v17
    %v307 = vpop.f32.mrf.mxu0
    %v308 = vadd.f32 %v233, %v307
    %v309 = vpop.f32.mrf.mxu0
    %310 = vmatprep.mubr.f32.mxu0 %v26
    %311 = vmatmul.mubr.f32.gmra.mxu0 %v25
    %v312 = vpop.f32.mrf.mxu0
    %v313 = vadd.f32 %v238, %v312
    %v314 = vpop.f32.mrf.mxu0
    %315 = vdwg.mxu0
    %316 = vmatprep.subr.mxu0 0.0
    %317 = vmatpush1.msra.mxu0 %v110
    %318 = vmatprep.subr.mxu0 0.0
    %319 = vmatpush1.msra.mxu0 %v109
    %320 = vmatprep.subr.mxu0 0.0
    %321 = vmatpush1.msra.mxu0 %v108
    %322 = vmatprep.subr.mxu0 0.0
    %323 = vmatpush1.msra.mxu0 %v107
    %324 = vmatprep.subr.mxu0 0.0
    %325 = vmatpush1.msra.mxu0 %v106
    %326 = vmatprep.subr.mxu0 0.0
    %327 = vmatpush1.msra.mxu0 %v105
    %328 = vmatprep.subr.mxu0 0.0
    %329 = vmatpush1.msra.mxu0 %v104
    %330 = vmatprep.subr.mxu0 0.0
    %331 = vmatpush1.msra.mxu0 %v103
    %332 = vmatprep.subr.mxu0 0.0
    %333 = vmatpush1.msra.mxu0 %v102
    %334 = vmatprep.subr.mxu0 0.0
    %335 = vmatpush1.msra.mxu0 %v101
    %336 = vmatprep.subr.mxu0 0.0
    %337 = vmatpush1.msra.mxu0 %v100
    %338 = vmatprep.subr.mxu0 0.0
    %339 = vmatpush1.msra.mxu0 %v99
    %340 = vmatprep.subr.mxu0 0.0
    %341 = vmatpush1.msra.mxu0 %v98
    %342 = vmatprep.subr.mxu0 0.0
    %343 = vmatpush1.msra.mxu0 %v97
    %344 = vmatprep.subr.mxu0 0.0
    %345 = vmatpush1.msra.mxu0 %v96
    %346 = vmatprep.subr.mxu0 0.0
    %347 = vmatpush1.msra.mxu0 %v95
    %348 = vmatprep.subr.mxu0 0.0
    %349 = vmatpush2.msra.mxu0 %v126
    %350 = vmatprep.subr.mxu0 0.0
    %351 = vmatpush2.msra.mxu0 %v125
    %352 = vmatprep.subr.mxu0 0.0
    %353 = vmatpush2.msra.mxu0 %v124
    %354 = vmatprep.subr.mxu0 0.0
    %355 = vmatpush2.msra.mxu0 %v123
    %356 = vmatprep.subr.mxu0 0.0
    %357 = vmatpush2.msra.mxu0 %v122
    %358 = vmatprep.subr.mxu0 0.0
    %359 = vmatpush2.msra.mxu0 %v121
    %360 = vmatprep.subr.mxu0 0.0
    %361 = vmatpush2.msra.mxu0 %v120
    %362 = vmatprep.subr.mxu0 0.0
    %363 = vmatpush2.msra.mxu0 %v119
    %364 = vmatprep.subr.mxu0 0.0
    %365 = vmatpush2.msra.mxu0 %v118
    %366 = vmatprep.subr.mxu0 0.0
    %367 = vmatpush2.msra.mxu0 %v117
    %368 = vmatprep.subr.mxu0 0.0
    %369 = vmatpush2.msra.mxu0 %v116
    %370 = vmatprep.subr.mxu0 0.0
    %371 = vmatpush2.msra.mxu0 %v115
    %372 = vmatprep.subr.mxu0 0.0
    %373 = vmatpush2.msra.mxu0 %v114
    %374 = vmatprep.subr.mxu0 0.0
    %375 = vmatpush2.msra.mxu0 %v113
    %376 = vmatprep.subr.mxu0 0.0
    %377 = vmatpush2.msra.mxu0 %v112
    %378 = vmatprep.subr.mxu0 0.0
    %379 = vmatpush2.msra.mxu0 %v111
    %380 = vmatprep.mubr.f32.mxu0 %v20
    %381 = vmatmul.mubr.f32.gmra.mxu0 %v19
    %v382 = vpop.f32.mrf.mxu0
    %v383 = vadd.f32 %v308, %v382
    %v384 = vpop.f32.mrf.mxu0
    %385 = vmatprep.mubr.f32.mxu0 %v28
    %386 = vmatmul.mubr.f32.gmra.mxu0 %v27
    %v387 = vpop.f32.mrf.mxu0
    %v388 = vadd.f32 %v313, %v387
    %v389 = vpop.f32.mrf.mxu0
    %390 = vdwg.mxu0
    %391 = vmatprep.subr.mxu0 0.0
    %392 = vmatpush1.msra.mxu0 %v142
    %393 = vmatprep.subr.mxu0 0.0
    %394 = vmatpush1.msra.mxu0 %v141
    %395 = vmatprep.subr.mxu0 0.0
    %396 = vmatpush1.msra.mxu0 %v140
    %397 = vmatprep.subr.mxu0 0.0
    %398 = vmatpush1.msra.mxu0 %v139
    %399 = vmatprep.subr.mxu0 0.0
    %400 = vmatpush1.msra.mxu0 %v138
    %401 = vmatprep.subr.mxu0 0.0
    %402 = vmatpush1.msra.mxu0 %v137
    %403 = vmatprep.subr.mxu0 0.0
    %404 = vmatpush1.msra.mxu0 %v136
    %405 = vmatprep.subr.mxu0 0.0
    %406 = vmatpush1.msra.mxu0 %v135
    %407 = vmatprep.subr.mxu0 0.0
    %408 = vmatpush1.msra.mxu0 %v134
    %409 = vmatprep.subr.mxu0 0.0
    %410 = vmatpush1.msra.mxu0 %v133
    %411 = vmatprep.subr.mxu0 0.0
    %412 = vmatpush1.msra.mxu0 %v132
    %413 = vmatprep.subr.mxu0 0.0
    %414 = vmatpush1.msra.mxu0 %v131
    %415 = vmatprep.subr.mxu0 0.0
    %416 = vmatpush1.msra.mxu0 %v130
    %417 = vmatprep.subr.mxu0 0.0
    %418 = vmatpush1.msra.mxu0 %v129
    %419 = vmatprep.subr.mxu0 0.0
    %420 = vmatpush1.msra.mxu0 %v128
    %421 = vmatprep.subr.mxu0 0.0
    %422 = vmatpush1.msra.mxu0 %v127
    %423 = vmatprep.subr.mxu0 0.0
    %424 = vmatpush2.msra.mxu0 %v158
    %425 = vmatprep.subr.mxu0 0.0
    %426 = vmatpush2.msra.mxu0 %v157
    %427 = vmatprep.subr.mxu0 0.0
    %428 = vmatpush2.msra.mxu0 %v156
    %429 = vmatprep.subr.mxu0 0.0
    %430 = vmatpush2.msra.mxu0 %v155
    %431 = vmatprep.subr.mxu0 0.0
    %432 = vmatpush2.msra.mxu0 %v154
    %433 = vmatprep.subr.mxu0 0.0
    %434 = vmatpush2.msra.mxu0 %v153
    %435 = vmatprep.subr.mxu0 0.0
    %436 = vmatpush2.msra.mxu0 %v152
    %437 = vmatprep.subr.mxu0 0.0
    %438 = vmatpush2.msra.mxu0 %v151
    %439 = vmatprep.subr.mxu0 0.0
    %440 = vmatpush2.msra.mxu0 %v150
    %441 = vmatprep.subr.mxu0 0.0
    %442 = vmatpush2.msra.mxu0 %v149
    %443 = vmatprep.subr.mxu0 0.0
    %444 = vmatpush2.msra.mxu0 %v148
    %445 = vmatprep.subr.mxu0 0.0
    %446 = vmatpush2.msra.mxu0 %v147
    %447 = vmatprep.subr.mxu0 0.0
    %448 = vmatpush2.msra.mxu0 %v146
    %449 = vmatprep.subr.mxu0 0.0
    %450 = vmatpush2.msra.mxu0 %v145
    %451 = vmatprep.subr.mxu0 0.0
    %452 = vmatpush2.msra.mxu0 %v144
    %453 = vmatprep.subr.mxu0 0.0
    %454 = vmatpush2.msra.mxu0 %v143
    %455 = vmatprep.mubr.f32.mxu0 %v22
    %456 = vmatmul.mubr.f32.gmra.mxu0 %v21
    %v457 = vpop.f32.mrf.mxu0
    %v458 = vadd.f32 %v383, %v457
    %v459 = vpop.f32.mrf.mxu0
    %460 = vmatprep.mubr.f32.mxu0 %v30
    %461 = vmatmul.mubr.f32.gmra.mxu0 %v29
    %v462 = vpop.f32.mrf.mxu0
    %v463 = vadd.f32 %v388, %v462
    %v464 = vpop.f32.mrf.mxu0
    %465 = vdwg.mxu0
    %v466 = vmul.f32 %v458, %v458
    %v467 = vmul.f32 %v463, %v463
    %468 = vadd.xlane.f32.xlu0 %v466
    %v469 = vpop.xlane.xlu0 %468
    %470 = vadd.xlane.f32.xlu0 %v467
    %v471 = vpop.xlane.xlu0 %470
    %v472 = vrsqrt.pop %v469
    %v473 = vrsqrt.pop %v471
    %v474 = vmul.f32 %v458, %v472
    %v475 = vmul.f32 %v463, %v473
    %476 = vst [vmem:[#allocation2] sm:$0xff] %v474
    %477 = vst [vmem:[#allocation2 + $0x8] sm:$0xff] %v475
    // Predicated region
    $region14: #{embed_forward.1} parent=1 // pred_check
      _
    $region15: #{embed_forward.1} parent=1 // pred_check_branch
      %479 = sbr.rel (0) target = $region17
    $region16: #{embed_forward.1} parent=1 // pred_region
      %s481 = ssub.s32 256, 256
      %482 = vsyncadd [#allocation3], %s481
      %s483 = sshll.u32 [#allocation2], 4
      %s484 = int_to_ptr.vmem [resolvable:$true] %s483
      %489 = dma.vmem_to_hbm [thread:$0]  %s484, 256, %s3, [#allocation3], 128, 128, 8
    $region17: #{embed_forward.1} parent=1 // pred_fallthru
      _
    // Predicated region
    $region18: #{embed_forward.1} parent=1 // pred_check
      _
    $region19: #{embed_forward.1} parent=1 // pred_check_branch
      %491 = sbr.rel (0) target = $region21
    $region20: #{embed_forward.1} parent=1 // pred_region
      %492 = dma.done [#allocation3], 256
    $region21: #{embed_forward.1} parent=1 // pred_fallthru
      _
    %493 = vsyncpa [#allocation3], 1

</llo_original>
